<compile_context>
chip_gen: v5e
topology: v5e:2x2
jax: 0.10.0
libtpu: 0.0.40
codegen_flags: <defaults>
</compile_context>

<pallas_src>
import jax
import jax.numpy as jnp
from jax.experimental import pallas as pl
from jax.experimental.pallas import tpu as pltpu


def conv2d_silu_pallas(x, weight, bias):
    """x: (1, C, H, W) f32; weight: (OC, C, 4, 4); bias: (OC,). Returns NCHW."""
    N, C, H, W = x.shape
    OC, Cw, KH, KW = weight.shape
    stride, padding = 2, 1
    assert N == 1 and Cw == C and KH == 4 and KW == 4

    OH = (H + 2 * padding - KH) // stride + 1          # 32
    OW = (W + 2 * padding - KW) // stride + 1          # 32
    Hp, Wp = H + 2 * padding, W + 2 * padding          # 66, 66
    assert Hp % 2 == 0 and Wp % 2 == 0
    SH, SW = Hp // 2, Wp // 2                          # 33, 33 sub-image size
    S = SH * SW                                        # 1089 flattened sub-image
    assert OH + 1 <= SH and OW + 1 <= SW
    ACC_W = (OH - 1) * SW + OW                         # 1055 accumulator width
    OCP = 8                                            # OC padded to a full vreg row group

    # ---------------- XLA glue (single small fused transform) ----------------
    # Space-to-depth of the padded input:
    #   r[(ph*2+pw)*C + c, i*SW + j] = x_pad[c, 2i+ph, 2j+pw]
    xf = x[0].astype(jnp.float32)                                   # (C, H, W)
    x_pad = jnp.pad(xf, ((0, 0), (padding, padding), (padding, padding)))
    r_km = (x_pad.reshape(C, SH, 2, SW, 2)                          # (c, i, ph, j, pw)
                 .transpose(2, 4, 0, 1, 3)                          # (ph, pw, c, i, j)
                 .reshape(2 * 2 * C, S))                            # (12, 1089)

    # Weights grouped by (dh, dw); column order (ph, pw, c) matches r_km rows.
    #   wg[(dh*2+dw)*OCP + oc, (ph*2+pw)*C + c] = w[oc, c, 2dh+ph, 2dw+pw]
    w6 = weight.astype(jnp.float32).reshape(OC, C, 2, 2, 2, 2)      # (oc,c,dh,ph,dw,pw)
    wt = w6.transpose(2, 4, 0, 3, 5, 1)                             # (dh,dw,oc,ph,pw,c)
    wt = jnp.pad(wt, ((0, 0), (0, 0), (0, OCP - OC), (0, 0), (0, 0), (0, 0)))
    wg = wt.reshape(2 * 2 * OCP, 2 * 2 * C)                         # (32, 12)

    b_p = jnp.pad(bias.astype(jnp.float32), (0, OCP - OC)).reshape(OCP, 1)

    # ----------------------------- Pallas kernel -----------------------------
    def _kernel(wg_ref, r_ref, b_ref, o_ref):
        # One MXU matmul covering all four (dh, dw) tap groups at once.
        contrib = jnp.dot(wg_ref[...], r_ref[...],
                          preferred_element_type=jnp.float32)       # (4*OCP, S)

        # Each group's contribution is the same matmul result shifted by a
        # constant lane offset dh*SW + dw (unit-stride slices, no relayout).
        acc = None
        for dh in range(2):
            for dw in range(2):
                g = dh * 2 + dw
                shift = dh * SW + dw
                piece = contrib[g * OCP:(g + 1) * OCP, shift:shift + ACC_W]
                acc = piece if acc is None else acc + piece         # (OCP, ACC_W)

        v = acc + b_ref[...]                                        # bias broadcast

        # SiLU = v * sigmoid(v); exp + approx reciprocal on the EUP slot,
        # one Newton step restores f32-level accuracy without an f32 divide.
        d = 1.0 + jnp.exp(-v)
        inv = pl.reciprocal(d, approx=True)
        inv = inv * (2.0 - d * inv)
        y = v * inv                                                 # (OCP, ACC_W)

        # Compact the SW(=33)-strided rows into the dense (OC, OH*OW) output.
        for oh in range(OH):
            o_ref[:, oh * OW:(oh + 1) * OW] = y[:OC, oh * SW: oh * SW + OW]

    out = pl.pallas_call(
        _kernel,
        out_shape=jax.ShapeDtypeStruct((OC, OH * OW), jnp.float32),
        in_specs=[
            pl.BlockSpec(memory_space=pltpu.MemorySpace.VMEM),   # wg   (32, 12)
            pl.BlockSpec(memory_space=pltpu.MemorySpace.VMEM),   # r_km (12, 1089)
            pl.BlockSpec(memory_space=pltpu.MemorySpace.VMEM),   # bias (8, 1)
        ],
        out_specs=pl.BlockSpec(memory_space=pltpu.MemorySpace.VMEM),
    )(wg, r_km, b_p)

    # (OC, OH*OW) is byte-identical to (1, OC, OH, OW) -> metadata-only reshape.
    return out.reshape(1, OC, OH, OW)


if __name__ == "__main__":
    key = jax.random.PRNGKey(0)
    kx, kw, kb = jax.random.split(key, 3)

    # Module-implied shapes: input (1, 3, 64, 64); Conv2d(3, 6, 4, stride=2, pad=1)
    x = jax.random.normal(kx, (1, 3, 64, 64), dtype=jnp.float32)
    weight = jax.random.normal(kw, (6, 3, 4, 4), dtype=jnp.float32) * 0.1
    bias = jax.random.normal(kb, (6,), dtype=jnp.float32) * 0.1

    y = jax.jit(conv2d_silu_pallas)(x, weight, bias)
    jax.block_until_ready(y)

    # Reference: XLA conv (NCHW / OIHW) + bias, then x * sigmoid(x)
    v1_ref = jax.lax.conv_general_dilated(
        x, weight, window_strides=(2, 2), padding=((1, 1), (1, 1)),
        dimension_numbers=("NCHW", "OIHW", "NCHW"),
    ) + bias.reshape(1, 6, 1, 1)
    y_ref = v1_ref * jax.nn.sigmoid(v1_ref)

    assert y.shape == (1, 6, 32, 32), y.shape
    max_err = float(jnp.max(jnp.abs(y - y_ref)))
    assert jnp.allclose(y, y_ref, atol=1e-3, rtol=1e-3), max_err
    print("KERNEL_OK")
</pallas_src>

<mosaic_0001>
module attributes {stable_mosaic.version = 11 : i64} {
  func.func @_kernel(%arg0: memref<32x12xf32, #tpu.memory_space<vmem>>, %arg1: memref<12x1089xf32, #tpu.memory_space<vmem>>, %arg2: memref<8x1xf32, #tpu.memory_space<vmem>>, %arg3: memref<6x1024xf32, #tpu.memory_space<vmem>>) attributes {dimension_semantics = [], scalar_prefetch = 0 : i64, scratch_operands = 0 : i64, tpu.core_type = #tpu.core_type<tc>} {
    %c0 = arith.constant 0 : index
    %c0_0 = arith.constant 0 : index
    %0 = vector.load %arg0[%c0, %c0_0] : memref<32x12xf32, #tpu.memory_space<vmem>>, vector<32x12xf32>
    %c0_1 = arith.constant 0 : index
    %c0_2 = arith.constant 0 : index
    %1 = vector.load %arg1[%c0_1, %c0_2] : memref<12x1089xf32, #tpu.memory_space<vmem>>, vector<12x1089xf32>
    %cst = arith.constant dense<0.000000e+00> : vector<32x1089xf32>
    %2 = tpu.matmul %0, %1, %cst {dimension_numbers = #tpu.dot_dimension_numbers<[1], [0], [0], [1], [0, 0, 1, 1], [], []>} : vector<32x12xf32>, vector<12x1089xf32>, vector<32x1089xf32> -> vector<32x1089xf32>
    %3 = vector.extract_strided_slice %2 {offsets = [0, 0], sizes = [8, 1055], strides = [1, 1]} : vector<32x1089xf32> to vector<8x1055xf32>
    %4 = vector.extract_strided_slice %2 {offsets = [8, 1], sizes = [8, 1055], strides = [1, 1]} : vector<32x1089xf32> to vector<8x1055xf32>
    %5 = arith.addf %3, %4 : vector<8x1055xf32>
    %6 = vector.extract_strided_slice %2 {offsets = [16, 33], sizes = [8, 1055], strides = [1, 1]} : vector<32x1089xf32> to vector<8x1055xf32>
    %7 = arith.addf %5, %6 : vector<8x1055xf32>
    %8 = vector.extract_strided_slice %2 {offsets = [24, 34], sizes = [8, 1055], strides = [1, 1]} : vector<32x1089xf32> to vector<8x1055xf32>
    %9 = arith.addf %7, %8 : vector<8x1055xf32>
    %c0_3 = arith.constant 0 : index
    %c0_4 = arith.constant 0 : index
    %10 = vector.load %arg2[%c0_3, %c0_4] : memref<8x1xf32, #tpu.memory_space<vmem>>, vector<8x1xf32>
    %11 = vector.broadcast %10 : vector<8x1xf32> to vector<8x1055xf32>
    %12 = arith.addf %9, %11 : vector<8x1055xf32>
    %cst_5 = arith.constant 0.000000e+00 : f32
    %13 = vector.broadcast %cst_5 : f32 to vector<8x1055xf32>
    %14 = arith.subf %13, %12 : vector<8x1055xf32>
    %15 = math.exp %14 : vector<8x1055xf32>
    %cst_6 = arith.constant 1.000000e+00 : f32
    %16 = vector.broadcast %cst_6 : f32 to vector<8x1055xf32>
    %17 = arith.addf %16, %15 : vector<8x1055xf32>
    %18 = tpu.reciprocal %17 {approx = true} : vector<8x1055xf32> -> vector<8x1055xf32>
    %19 = arith.mulf %17, %18 : vector<8x1055xf32>
    %cst_7 = arith.constant 2.000000e+00 : f32
    %20 = vector.broadcast %cst_7 : f32 to vector<8x1055xf32>
    %21 = arith.subf %20, %19 : vector<8x1055xf32>
    %22 = arith.mulf %18, %21 : vector<8x1055xf32>
    %23 = arith.mulf %12, %22 : vector<8x1055xf32>
    %24 = vector.extract_strided_slice %23 {offsets = [0, 0], sizes = [6, 32], strides = [1, 1]} : vector<8x1055xf32> to vector<6x32xf32>
    %c0_8 = arith.constant 0 : index
    %c0_9 = arith.constant 0 : index
    %25 = vector.load %arg3[%c0_8, %c0_9] : memref<6x1024xf32, #tpu.memory_space<vmem>>, vector<6x32xf32>
    tpu.vector_store %arg3[%c0_8, %c0_9], %24 {strides = array<i32>} : memref<6x1024xf32, #tpu.memory_space<vmem>>, vector<6x32xf32>,
    %26 = vector.extract_strided_slice %23 {offsets = [0, 33], sizes = [6, 32], strides = [1, 1]} : vector<8x1055xf32> to vector<6x32xf32>
    %c0_10 = arith.constant 0 : index
    %c32 = arith.constant 32 : index
    %27 = vector.load %arg3[%c0_10, %c32] : memref<6x1024xf32, #tpu.memory_space<vmem>>, vector<6x32xf32>
    tpu.vector_store %arg3[%c0_10, %c32], %26 {strides = array<i32>} : memref<6x1024xf32, #tpu.memory_space<vmem>>, vector<6x32xf32>,
    %28 = vector.extract_strided_slice %23 {offsets = [0, 66], sizes = [6, 32], strides = [1, 1]} : vector<8x1055xf32> to vector<6x32xf32>
    %c0_11 = arith.constant 0 : index
    %c64 = arith.constant 64 : index
    %29 = vector.load %arg3[%c0_11, %c64] : memref<6x1024xf32, #tpu.memory_space<vmem>>, vector<6x32xf32>
    tpu.vector_store %arg3[%c0_11, %c64], %28 {strides = array<i32>} : memref<6x1024xf32, #tpu.memory_space<vmem>>, vector<6x32xf32>,
    %30 = vector.extract_strided_slice %23 {offsets = [0, 99], sizes = [6, 32], strides = [1, 1]} : vector<8x1055xf32> to vector<6x32xf32>
    %c0_12 = arith.constant 0 : index
    %c96 = arith.constant 96 : index
    %31 = vector.load %arg3[%c0_12, %c96] : memref<6x1024xf32, #tpu.memory_space<vmem>>, vector<6x32xf32>
    tpu.vector_store %arg3[%c0_12, %c96], %30 {strides = array<i32>} : memref<6x1024xf32, #tpu.memory_space<vmem>>, vector<6x32xf32>,
    %32 = vector.extract_strided_slice %23 {offsets = [0, 132], sizes = [6, 32], strides = [1, 1]} : vector<8x1055xf32> to vector<6x32xf32>
    %c0_13 = arith.constant 0 : index
    %c128 = arith.constant 128 : index
    %33 = vector.load %arg3[%c0_13, %c128] : memref<6x1024xf32, #tpu.memory_space<vmem>>, vector<6x32xf32>
    tpu.vector_store %arg3[%c0_13, %c128], %32 {strides = array<i32>} : memref<6x1024xf32, #tpu.memory_space<vmem>>, vector<6x32xf32>,
    %34 = vector.extract_strided_slice %23 {offsets = [0, 165], sizes = [6, 32], strides = [1, 1]} : vector<8x1055xf32> to vector<6x32xf32>
    %c0_14 = arith.constant 0 : index
    %c160 = arith.constant 160 : index
    %35 = vector.load %arg3[%c0_14, %c160] : memref<6x1024xf32, #tpu.memory_space<vmem>>, vector<6x32xf32>
    tpu.vector_store %arg3[%c0_14, %c160], %34 {strides = array<i32>} : memref<6x1024xf32, #tpu.memory_space<vmem>>, vector<6x32xf32>,
    %36 = vector.extract_strided_slice %23 {offsets = [0, 198], sizes = [6, 32], strides = [1, 1]} : vector<8x1055xf32> to vector<6x32xf32>
    %c0_15 = arith.constant 0 : index
    %c192 = arith.constant 192 : index
    %37 = vector.load %arg3[%c0_15, %c192] : memref<6x1024xf32, #tpu.memory_space<vmem>>, vector<6x32xf32>
    tpu.vector_store %arg3[%c0_15, %c192], %36 {strides = array<i32>} : memref<6x1024xf32, #tpu.memory_space<vmem>>, vector<6x32xf32>,
    %38 = vector.extract_strided_slice %23 {offsets = [0, 231], sizes = [6, 32], strides = [1, 1]} : vector<8x1055xf32> to vector<6x32xf32>
    %c0_16 = arith.constant 0 : index
    %c224 = arith.constant 224 : index
    %39 = vector.load %arg3[%c0_16, %c224] : memref<6x1024xf32, #tpu.memory_space<vmem>>, vector<6x32xf32>
    tpu.vector_store %arg3[%c0_16, %c224], %38 {strides = array<i32>} : memref<6x1024xf32, #tpu.memory_space<vmem>>, vector<6x32xf32>,
    %40 = vector.extract_strided_slice %23 {offsets = [0, 264], sizes = [6, 32], strides = [1, 1]} : vector<8x1055xf32> to vector<6x32xf32>
    %c0_17 = arith.constant 0 : index
    %c256 = arith.constant 256 : index
    %41 = vector.load %arg3[%c0_17, %c256] : memref<6x1024xf32, #tpu.memory_space<vmem>>, vector<6x32xf32>
    tpu.vector_store %arg3[%c0_17, %c256], %40 {strides = array<i32>} : memref<6x1024xf32, #tpu.memory_space<vmem>>, vector<6x32xf32>,
    %42 = vector.extract_strided_slice %23 {offsets = [0, 297], sizes = [6, 32], strides = [1, 1]} : vector<8x1055xf32> to vector<6x32xf32>
    %c0_18 = arith.constant 0 : index
    %c288 = arith.constant 288 : index
    %43 = vector.load %arg3[%c0_18, %c288] : memref<6x1024xf32, #tpu.memory_space<vmem>>, vector<6x32xf32>
    tpu.vector_store %arg3[%c0_18, %c288], %42 {strides = array<i32>} : memref<6x1024xf32, #tpu.memory_space<vmem>>, vector<6x32xf32>,
    %44 = vector.extract_strided_slice %23 {offsets = [0, 330], sizes = [6, 32], strides = [1, 1]} : vector<8x1055xf32> to vector<6x32xf32>
    %c0_19 = arith.constant 0 : index
    %c320 = arith.constant 320 : index
    %45 = vector.load %arg3[%c0_19, %c320] : memref<6x1024xf32, #tpu.memory_space<vmem>>, vector<6x32xf32>
    tpu.vector_store %arg3[%c0_19, %c320], %44 {strides = array<i32>} : memref<6x1024xf32, #tpu.memory_space<vmem>>, vector<6x32xf32>,
    %46 = vector.extract_strided_slice %23 {offsets = [0, 363], sizes = [6, 32], strides = [1, 1]} : vector<8x1055xf32> to vector<6x32xf32>
    %c0_20 = arith.constant 0 : index
    %c352 = arith.constant 352 : index
    %47 = vector.load %arg3[%c0_20, %c352] : memref<6x1024xf32, #tpu.memory_space<vmem>>, vector<6x32xf32>
    tpu.vector_store %arg3[%c0_20, %c352], %46 {strides = array<i32>} : memref<6x1024xf32, #tpu.memory_space<vmem>>, vector<6x32xf32>,
    %48 = vector.extract_strided_slice %23 {offsets = [0, 396], sizes = [6, 32], strides = [1, 1]} : vector<8x1055xf32> to vector<6x32xf32>
    %c0_21 = arith.constant 0 : index
    %c384 = arith.constant 384 : index
    %49 = vector.load %arg3[%c0_21, %c384] : memref<6x1024xf32, #tpu.memory_space<vmem>>, vector<6x32xf32>
    tpu.vector_store %arg3[%c0_21, %c384], %48 {strides = array<i32>} : memref<6x1024xf32, #tpu.memory_space<vmem>>, vector<6x32xf32>,
    %50 = vector.extract_strided_slice %23 {offsets = [0, 429], sizes = [6, 32], strides = [1, 1]} : vector<8x1055xf32> to vector<6x32xf32>
    %c0_22 = arith.constant 0 : index
    %c416 = arith.constant 416 : index
    %51 = vector.load %arg3[%c0_22, %c416] : memref<6x1024xf32, #tpu.memory_space<vmem>>, vector<6x32xf32>
    tpu.vector_store %arg3[%c0_22, %c416], %50 {strides = array<i32>} : memref<6x1024xf32, #tpu.memory_space<vmem>>, vector<6x32xf32>,
    %52 = vector.extract_strided_slice %23 {offsets = [0, 462], sizes = [6, 32], strides = [1, 1]} : vector<8x1055xf32> to vector<6x32xf32>
    %c0_23 = arith.constant 0 : index
    %c448 = arith.constant 448 : index
    %53 = vector.load %arg3[%c0_23, %c448] : memref<6x1024xf32, #tpu.memory_space<vmem>>, vector<6x32xf32>
    tpu.vector_store %arg3[%c0_23, %c448], %52 {strides = array<i32>} : memref<6x1024xf32, #tpu.memory_space<vmem>>, vector<6x32xf32>,
    %54 = vector.extract_strided_slice %23 {offsets = [0, 495], sizes = [6, 32], strides = [1, 1]} : vector<8x1055xf32> to vector<6x32xf32>
    %c0_24 = arith.constant 0 : index
    %c480 = arith.constant 480 : index
    %55 = vector.load %arg3[%c0_24, %c480] : memref<6x1024xf32, #tpu.memory_space<vmem>>, vector<6x32xf32>
    tpu.vector_store %arg3[%c0_24, %c480], %54 {strides = array<i32>} : memref<6x1024xf32, #tpu.memory_space<vmem>>, vector<6x32xf32>,
    %56 = vector.extract_strided_slice %23 {offsets = [0, 528], sizes = [6, 32], strides = [1, 1]} : vector<8x1055xf32> to vector<6x32xf32>
    %c0_25 = arith.constant 0 : index
    %c512 = arith.constant 512 : index
    %57 = vector.load %arg3[%c0_25, %c512] : memref<6x1024xf32, #tpu.memory_space<vmem>>, vector<6x32xf32>
    tpu.vector_store %arg3[%c0_25, %c512], %56 {strides = array<i32>} : memref<6x1024xf32, #tpu.memory_space<vmem>>, vector<6x32xf32>,
    %58 = vector.extract_strided_slice %23 {offsets = [0, 561], sizes = [6, 32], strides = [1, 1]} : vector<8x1055xf32> to vector<6x32xf32>
    %c0_26 = arith.constant 0 : index
    %c544 = arith.constant 544 : index
    %59 = vector.load %arg3[%c0_26, %c544] : memref<6x1024xf32, #tpu.memory_space<vmem>>, vector<6x32xf32>
    tpu.vector_store %arg3[%c0_26, %c544], %58 {strides = array<i32>} : memref<6x1024xf32, #tpu.memory_space<vmem>>, vector<6x32xf32>,
    %60 = vector.extract_strided_slice %23 {offsets = [0, 594], sizes = [6, 32], strides = [1, 1]} : vector<8x1055xf32> to vector<6x32xf32>
    %c0_27 = arith.constant 0 : index
    %c576 = arith.constant 576 : index
    %61 = vector.load %arg3[%c0_27, %c576] : memref<6x1024xf32, #tpu.memory_space<vmem>>, vector<6x32xf32>
    tpu.vector_store %arg3[%c0_27, %c576], %60 {strides = array<i32>} : memref<6x1024xf32, #tpu.memory_space<vmem>>, vector<6x32xf32>,
    %62 = vector.extract_strided_slice %23 {offsets = [0, 627], sizes = [6, 32], strides = [1, 1]} : vector<8x1055xf32> to vector<6x32xf32>
    %c0_28 = arith.constant 0 : index
    %c608 = arith.constant 608 : index
    %63 = vector.load %arg3[%c0_28, %c608] : memref<6x1024xf32, #tpu.memory_space<vmem>>, vector<6x32xf32>
    tpu.vector_store %arg3[%c0_28, %c608], %62 {strides = array<i32>} : memref<6x1024xf32, #tpu.memory_space<vmem>>, vector<6x32xf32>,
    %64 = vector.extract_strided_slice %23 {offsets = [0, 660], sizes = [6, 32], strides = [1, 1]} : vector<8x1055xf32> to vector<6x32xf32>
    %c0_29 = arith.constant 0 : index
    %c640 = arith.constant 640 : index
    %65 = vector.load %arg3[%c0_29, %c640] : memref<6x1024xf32, #tpu.memory_space<vmem>>, vector<6x32xf32>
    tpu.vector_store %arg3[%c0_29, %c640], %64 {strides = array<i32>} : memref<6x1024xf32, #tpu.memory_space<vmem>>, vector<6x32xf32>,
    %66 = vector.extract_strided_slice %23 {offsets = [0, 693], sizes = [6, 32], strides = [1, 1]} : vector<8x1055xf32> to vector<6x32xf32>
    %c0_30 = arith.constant 0 : index
    %c672 = arith.constant 672 : index
    %67 = vector.load %arg3[%c0_30, %c672] : memref<6x1024xf32, #tpu.memory_space<vmem>>, vector<6x32xf32>
    tpu.vector_store %arg3[%c0_30, %c672], %66 {strides = array<i32>} : memref<6x1024xf32, #tpu.memory_space<vmem>>, vector<6x32xf32>,
    %68 = vector.extract_strided_slice %23 {offsets = [0, 726], sizes = [6, 32], strides = [1, 1]} : vector<8x1055xf32> to vector<6x32xf32>
    %c0_31 = arith.constant 0 : index
    %c704 = arith.constant 704 : index
    %69 = vector.load %arg3[%c0_31, %c704] : memref<6x1024xf32, #tpu.memory_space<vmem>>, vector<6x32xf32>
    tpu.vector_store %arg3[%c0_31, %c704], %68 {strides = array<i32>} : memref<6x1024xf32, #tpu.memory_space<vmem>>, vector<6x32xf32>,
    %70 = vector.extract_strided_slice %23 {offsets = [0, 759], sizes = [6, 32], strides = [1, 1]} : vector<8x1055xf32> to vector<6x32xf32>
    %c0_32 = arith.constant 0 : index
    %c736 = arith.constant 736 : index
    %71 = vector.load %arg3[%c0_32, %c736] : memref<6x1024xf32, #tpu.memory_space<vmem>>, vector<6x32xf32>
    tpu.vector_store %arg3[%c0_32, %c736], %70 {strides = array<i32>} : memref<6x1024xf32, #tpu.memory_space<vmem>>, vector<6x32xf32>,
    %72 = vector.extract_strided_slice %23 {offsets = [0, 792], sizes = [6, 32], strides = [1, 1]} : vector<8x1055xf32> to vector<6x32xf32>
    %c0_33 = arith.constant 0 : index
    %c768 = arith.constant 768 : index
    %73 = vector.load %arg3[%c0_33, %c768] : memref<6x1024xf32, #tpu.memory_space<vmem>>, vector<6x32xf32>
    tpu.vector_store %arg3[%c0_33, %c768], %72 {strides = array<i32>} : memref<6x1024xf32, #tpu.memory_space<vmem>>, vector<6x32xf32>,
    %74 = vector.extract_strided_slice %23 {offsets = [0, 825], sizes = [6, 32], strides = [1, 1]} : vector<8x1055xf32> to vector<6x32xf32>
    %c0_34 = arith.constant 0 : index
    %c800 = arith.constant 800 : index
    %75 = vector.load %arg3[%c0_34, %c800] : memref<6x1024xf32, #tpu.memory_space<vmem>>, vector<6x32xf32>
    tpu.vector_store %arg3[%c0_34, %c800], %74 {strides = array<i32>} : memref<6x1024xf32, #tpu.memory_space<vmem>>, vector<6x32xf32>,
    %76 = vector.extract_strided_slice %23 {offsets = [0, 858], sizes = [6, 32], strides = [1, 1]} : vector<8x1055xf32> to vector<6x32xf32>
    %c0_35 = arith.constant 0 : index
    %c832 = arith.constant 832 : index
    %77 = vector.load %arg3[%c0_35, %c832] : memref<6x1024xf32, #tpu.memory_space<vmem>>, vector<6x32xf32>
    tpu.vector_store %arg3[%c0_35, %c832], %76 {strides = array<i32>} : memref<6x1024xf32, #tpu.memory_space<vmem>>, vector<6x32xf32>,
    %78 = vector.extract_strided_slice %23 {offsets = [0, 891], sizes = [6, 32], strides = [1, 1]} : vector<8x1055xf32> to vector<6x32xf32>
    %c0_36 = arith.constant 0 : index
    %c864 = arith.constant 864 : index
    %79 = vector.load %arg3[%c0_36, %c864] : memref<6x1024xf32, #tpu.memory_space<vmem>>, vector<6x32xf32>
    tpu.vector_store %arg3[%c0_36, %c864], %78 {strides = array<i32>} : memref<6x1024xf32, #tpu.memory_space<vmem>>, vector<6x32xf32>,
    %80 = vector.extract_strided_slice %23 {offsets = [0, 924], sizes = [6, 32], strides = [1, 1]} : vector<8x1055xf32> to vector<6x32xf32>
    %c0_37 = arith.constant 0 : index
    %c896 = arith.constant 896 : index
    %81 = vector.load %arg3[%c0_37, %c896] : memref<6x1024xf32, #tpu.memory_space<vmem>>, vector<6x32xf32>
    tpu.vector_store %arg3[%c0_37, %c896], %80 {strides = array<i32>} : memref<6x1024xf32, #tpu.memory_space<vmem>>, vector<6x32xf32>,
    %82 = vector.extract_strided_slice %23 {offsets = [0, 957], sizes = [6, 32], strides = [1, 1]} : vector<8x1055xf32> to vector<6x32xf32>
    %c0_38 = arith.constant 0 : index
    %c928 = arith.constant 928 : index
    %83 = vector.load %arg3[%c0_38, %c928] : memref<6x1024xf32, #tpu.memory_space<vmem>>, vector<6x32xf32>
    tpu.vector_store %arg3[%c0_38, %c928], %82 {strides = array<i32>} : memref<6x1024xf32, #tpu.memory_space<vmem>>, vector<6x32xf32>,
    %84 = vector.extract_strided_slice %23 {offsets = [0, 990], sizes = [6, 32], strides = [1, 1]} : vector<8x1055xf32> to vector<6x32xf32>
    %c0_39 = arith.constant 0 : index
    %c960 = arith.constant 960 : index
    %85 = vector.load %arg3[%c0_39, %c960] : memref<6x1024xf32, #tpu.memory_space<vmem>>, vector<6x32xf32>
    tpu.vector_store %arg3[%c0_39, %c960], %84 {strides = array<i32>} : memref<6x1024xf32, #tpu.memory_space<vmem>>, vector<6x32xf32>,
    %86 = vector.extract_strided_slice %23 {offsets = [0, 1023], sizes = [6, 32], strides = [1, 1]} : vector<8x1055xf32> to vector<6x32xf32>
    %c0_40 = arith.constant 0 : index
    %c992 = arith.constant 992 : index
    %87 = vector.load %arg3[%c0_40, %c992] : memref<6x1024xf32, #tpu.memory_space<vmem>>, vector<6x32xf32>
    tpu.vector_store %arg3[%c0_40, %c992], %86 {strides = array<i32>} : memref<6x1024xf32, #tpu.memory_space<vmem>>, vector<6x32xf32>,
    return
  }
}

</mosaic_0001>

<llo_original>
// kernel: conv2d_silu_pallas.1
$region0: #{conv2d_silu_pallas.1}
  #allocation0 [shape = 'u32[]', space=smem, size = 0x4, offset = 0x4, fixed_abs, tag = 'smem constant byte address 0x4 - core index']
  #allocation1 [shape = 'u32[72,128]{1,0:T(1,128)}', space=vmem, size = 0x9000, scoped, tag = 'internal scratch']
  %s0 = inlined_call_operand.vmem [shape: f32[32,12], index: 0, kind: input, shape index: {}]
  %s1 = inlined_call_operand.vmem [shape: f32[12,1089], index: 1, kind: input, shape index: {}]
  %s2 = inlined_call_operand.vmem [shape: f32[8,1], index: 2, kind: input, shape index: {}]
  %s3 = inlined_call_operand.vmem [shape: f32[6,1024], index: 3, kind: output, shape index: {}]
  %s4 = sld [smem:[#allocation0]]
  $region22: #{conv2d_silu_pallas.1} parent=0
    _
  %s6 = ssub.s32 1, %s4
  %s7 = scalar_select 0, %s6, %s4
  // Predicated region
  $region2: #{conv2d_silu_pallas.1} parent=0 // pred_check
    _
  $region3: #{conv2d_silu_pallas.1} parent=0 // pred_check_branch
    %9 = sbr.rel (0) target = $region5
  $region4: #{conv2d_silu_pallas.1} parent=0 // pred_region
    _
  $region5: #{conv2d_silu_pallas.1} parent=0 // pred_fallthru
    _
  // Predicated region
  $region6: #{conv2d_silu_pallas.1} parent=0 // pred_check
    _
  $region7: #{conv2d_silu_pallas.1} parent=0 // pred_check_branch
    %11 = sbr.rel (0) target = $region9
  $region8: #{conv2d_silu_pallas.1} parent=0 // pred_region
    _
  $region9: #{conv2d_silu_pallas.1} parent=0 // pred_fallthru
    _
  // Predicated region
  $region10: #{conv2d_silu_pallas.1} parent=0 // pred_check
    _
  $region11: #{conv2d_silu_pallas.1} parent=0 // pred_check_branch
    %13 = sbr.rel (0) target = $region13
  $region12: #{conv2d_silu_pallas.1} parent=0 // pred_region
    _
  $region13: #{conv2d_silu_pallas.1} parent=0 // pred_fallthru
    _
  %v14 = vld [vmem:[%s0] sm:$0xff]
  %v15 = vld [vmem:[%s0 + $0x8] sm:$0xff]
  %v16 = vld [vmem:[%s0 + $0x10] sm:$0xff]
  %v17 = vld [vmem:[%s0 + $0x18] sm:$0xff]
  %v18 = vld [vmem:[%s1] sm:$0xff]
  %v19 = vld [vmem:[%s1 + $0x8] sm:$0xff]
  %v20 = vld [vmem:[%s1 + $0x10] sm:$0xff]
  %v21 = vld [vmem:[%s1 + $0x18] sm:$0xff]
  %v22 = vld [vmem:[%s1 + $0x20] sm:$0xff]
  %v23 = vld [vmem:[%s1 + $0x28] sm:$0xff]
  %v24 = vld [vmem:[%s1 + $0x30] sm:$0xff]
  %v25 = vld [vmem:[%s1 + $0x38] sm:$0xff]
  %v26 = vld [vmem:[%s1 + $0x40] sm:$0xff]
  %v27 = vld [vmem:[%s1 + $0x48] sm:$0xf]
  %v28 = vld [vmem:[%s1 + $0x50] sm:$0xf]
  %v29 = vld [vmem:[%s1 + $0x58] sm:$0xf]
  %v30 = vld [vmem:[%s1 + $0x60] sm:$0xf]
  %v31 = vld [vmem:[%s1 + $0x68] sm:$0xf]
  %v32 = vld [vmem:[%s1 + $0x70] sm:$0xf]
  %v33 = vld [vmem:[%s1 + $0x78] sm:$0xf]
  %v34 = vld [vmem:[%s1 + $0x80] sm:$0xf]
  %v35 = vld [vmem:[%s1 + $0x88] sm:$0xf]
  %vm36 = vcmask 97280
  %v38 = vsel %vm36, %v14, 0
  %v41 = vsel %vm36, %v15, 0
  %v44 = vsel %vm36, %v16, 0
  %v47 = vsel %vm36, %v17, 0
  %vm49 = vcmask 1043456
  %v51 = vsel %vm49, %v27, 0
  %v54 = vsel %vm49, %v28, 0
  %v57 = vsel %vm49, %v29, 0
  %v60 = vsel %vm49, %v30, 0
  %v63 = vsel %vm49, %v31, 0
  %v66 = vsel %vm49, %v32, 0
  %v69 = vsel %vm49, %v33, 0
  %v72 = vsel %vm49, %v34, 0
  %v75 = vsel %vm49, %v35, 0
  %77 = vmatpush.msra.mxu0 0.0
  %78 = vmatpush.msra.mxu0 0.0
  %79 = vmatpush.msra.mxu0 0.0
  %80 = vmatpush.msra.mxu0 0.0
  %81 = vmatpush.msra.mxu0 0.0
  %82 = vmatpush.msra.mxu0 0.0
  %83 = vmatpush.msra.mxu0 0.0
  %84 = vmatpush.msra.mxu0 0.0
  %85 = vmatpush.msra.mxu0 0.0
  %86 = vmatpush.msra.mxu0 0.0
  %87 = vmatpush.msra.mxu0 0.0
  %88 = vmatpush.msra.mxu0 0.0
  %89 = vmatpush.msra.mxu0 0.0
  %90 = vmatpush.msra.mxu0 0.0
  %91 = vmatpush.msra.mxu0 %v51
  %92 = vmatpush.msra.mxu0 %v18
  %93 = vmatmul.f32.gmra.mxu0 %v38
  %v94 = vpop.f32.mrf.mxu0
  %v95 = vadd.f32 0.0, %v94
  %96 = vmatmul.f32.gmra.mxu0 %v41
  %v97 = vpop.f32.mrf.mxu0
  %v98 = vadd.f32 0.0, %v97
  %99 = vmatmul.f32.gmra.mxu0 %v44
  %v100 = vpop.f32.mrf.mxu0
  %v101 = vadd.f32 0.0, %v100
  %102 = vmatmul.f32.gmra.mxu0 %v47
  %v103 = vpop.f32.mrf.mxu0
  %v104 = vadd.f32 0.0, %v103
  %105 = vdwg.mxu0
  %106 = vmatpush.msra.mxu0 0.0
  %107 = vmatpush.msra.mxu0 0.0
  %108 = vmatpush.msra.mxu0 0.0
  %109 = vmatpush.msra.mxu0 0.0
  %110 = vmatpush.msra.mxu0 0.0
  %111 = vmatpush.msra.mxu0 0.0
  %112 = vmatpush.msra.mxu0 0.0
  %113 = vmatpush.msra.mxu0 0.0
  %114 = vmatpush.msra.mxu0 0.0
  %115 = vmatpush.msra.mxu0 0.0
  %116 = vmatpush.msra.mxu0 0.0
  %117 = vmatpush.msra.mxu0 0.0
  %118 = vmatpush.msra.mxu0 0.0
  %119 = vmatpush.msra.mxu0 0.0
  %120 = vmatpush.msra.mxu0 %v54
  %121 = vmatpush.msra.mxu0 %v19
  %122 = vmatmul.f32.gmra.mxu0 %v38
  %v123 = vpop.f32.mrf.mxu0
  %v124 = vadd.f32 0.0, %v123
  %125 = vmatmul.f32.gmra.mxu0 %v41
  %v126 = vpop.f32.mrf.mxu0
  %v127 = vadd.f32 0.0, %v126
  %128 = vmatmul.f32.gmra.mxu0 %v44
  %v129 = vpop.f32.mrf.mxu0
  %v130 = vadd.f32 0.0, %v129
  %131 = vmatmul.f32.gmra.mxu0 %v47
  %v132 = vpop.f32.mrf.mxu0
  %v133 = vadd.f32 0.0, %v132
  %134 = vdwg.mxu0
  %135 = vmatpush.msra.mxu0 0.0
  %136 = vmatpush.msra.mxu0 0.0
  %137 = vmatpush.msra.mxu0 0.0
  %138 = vmatpush.msra.mxu0 0.0
  %139 = vmatpush.msra.mxu0 0.0
  %140 = vmatpush.msra.mxu0 0.0
  %141 = vmatpush.msra.mxu0 0.0
  %142 = vmatpush.msra.mxu0 0.0
  %143 = vmatpush.msra.mxu0 0.0
  %144 = vmatpush.msra.mxu0 0.0
  %145 = vmatpush.msra.mxu0 0.0
  %146 = vmatpush.msra.mxu0 0.0
  %147 = vmatpush.msra.mxu0 0.0
  %148 = vmatpush.msra.mxu0 0.0
  %149 = vmatpush.msra.mxu0 %v57
  %150 = vmatpush.msra.mxu0 %v20
  %151 = vmatmul.f32.gmra.mxu0 %v38
  %v152 = vpop.f32.mrf.mxu0
  %v153 = vadd.f32 0.0, %v152
  %154 = vmatmul.f32.gmra.mxu0 %v41
  %v155 = vpop.f32.mrf.mxu0
  %v156 = vadd.f32 0.0, %v155
  %157 = vmatmul.f32.gmra.mxu0 %v44
  %v158 = vpop.f32.mrf.mxu0
  %v159 = vadd.f32 0.0, %v158
  %160 = vmatmul.f32.gmra.mxu0 %v47
  %v161 = vpop.f32.mrf.mxu0
  %v162 = vadd.f32 0.0, %v161
  %163 = vdwg.mxu0
  %164 = vmatpush.msra.mxu0 0.0
  %165 = vmatpush.msra.mxu0 0.0
  %166 = vmatpush.msra.mxu0 0.0
  %167 = vmatpush.msra.mxu0 0.0
  %168 = vmatpush.msra.mxu0 0.0
  %169 = vmatpush.msra.mxu0 0.0
  %170 = vmatpush.msra.mxu0 0.0
  %171 = vmatpush.msra.mxu0 0.0
  %172 = vmatpush.msra.mxu0 0.0
  %173 = vmatpush.msra.mxu0 0.0
  %174 = vmatpush.msra.mxu0 0.0
  %175 = vmatpush.msra.mxu0 0.0
  %176 = vmatpush.msra.mxu0 0.0
  %177 = vmatpush.msra.mxu0 0.0
  %178 = vmatpush.msra.mxu0 %v60
  %179 = vmatpush.msra.mxu0 %v21
  %180 = vmatmul.f32.gmra.mxu0 %v38
  %v181 = vpop.f32.mrf.mxu0
  %v182 = vadd.f32 0.0, %v181
  %183 = vmatmul.f32.gmra.mxu0 %v41
  %v184 = vpop.f32.mrf.mxu0
  %v185 = vadd.f32 0.0, %v184
  %186 = vmatmul.f32.gmra.mxu0 %v44
  %v187 = vpop.f32.mrf.mxu0
  %v188 = vadd.f32 0.0, %v187
  %189 = vmatmul.f32.gmra.mxu0 %v47
  %v190 = vpop.f32.mrf.mxu0
  %v191 = vadd.f32 0.0, %v190
  %192 = vdwg.mxu0
  %193 = vmatpush.msra.mxu0 0.0
  %194 = vmatpush.msra.mxu0 0.0
  %195 = vmatpush.msra.mxu0 0.0
  %196 = vmatpush.msra.mxu0 0.0
  %197 = vmatpush.msra.mxu0 0.0
  %198 = vmatpush.msra.mxu0 0.0
  %199 = vmatpush.msra.mxu0 0.0
  %200 = vmatpush.msra.mxu0 0.0
  %201 = vmatpush.msra.mxu0 0.0
  %202 = vmatpush.msra.mxu0 0.0
  %203 = vmatpush.msra.mxu0 0.0
  %204 = vmatpush.msra.mxu0 0.0
  %205 = vmatpush.msra.mxu0 0.0
  %206 = vmatpush.msra.mxu0 0.0
  %207 = vmatpush.msra.mxu0 %v63
  %208 = vmatpush.msra.mxu0 %v22
  %209 = vmatmul.f32.gmra.mxu0 %v38
  %v210 = vpop.f32.mrf.mxu0
  %v211 = vadd.f32 0.0, %v210
  %212 = vmatmul.f32.gmra.mxu0 %v41
  %v213 = vpop.f32.mrf.mxu0
  %v214 = vadd.f32 0.0, %v213
  %215 = vmatmul.f32.gmra.mxu0 %v44
  %v216 = vpop.f32.mrf.mxu0
  %v217 = vadd.f32 0.0, %v216
  %218 = vmatmul.f32.gmra.mxu0 %v47
  %v219 = vpop.f32.mrf.mxu0
  %v220 = vadd.f32 0.0, %v219
  %221 = vdwg.mxu0
  %222 = vmatpush.msra.mxu0 0.0
  %223 = vmatpush.msra.mxu0 0.0
  %224 = vmatpush.msra.mxu0 0.0
  %225 = vmatpush.msra.mxu0 0.0
  %226 = vmatpush.msra.mxu0 0.0
  %227 = vmatpush.msra.mxu0 0.0
  %228 = vmatpush.msra.mxu0 0.0
  %229 = vmatpush.msra.mxu0 0.0
  %230 = vmatpush.msra.mxu0 0.0
  %231 = vmatpush.msra.mxu0 0.0
  %232 = vmatpush.msra.mxu0 0.0
  %233 = vmatpush.msra.mxu0 0.0
  %234 = vmatpush.msra.mxu0 0.0
  %235 = vmatpush.msra.mxu0 0.0
  %236 = vmatpush.msra.mxu0 %v66
  %237 = vmatpush.msra.mxu0 %v23
  %238 = vmatmul.f32.gmra.mxu0 %v38
  %v239 = vpop.f32.mrf.mxu0
  %v240 = vadd.f32 0.0, %v239
  %241 = vmatmul.f32.gmra.mxu0 %v41
  %v242 = vpop.f32.mrf.mxu0
  %v243 = vadd.f32 0.0, %v242
  %244 = vmatmul.f32.gmra.mxu0 %v44
  %v245 = vpop.f32.mrf.mxu0
  %v246 = vadd.f32 0.0, %v245
  %247 = vmatmul.f32.gmra.mxu0 %v47
  %v248 = vpop.f32.mrf.mxu0
  %v249 = vadd.f32 0.0, %v248
  %250 = vdwg.mxu0
  %251 = vmatpush.msra.mxu0 0.0
  %252 = vmatpush.msra.mxu0 0.0
  %253 = vmatpush.msra.mxu0 0.0
  %254 = vmatpush.msra.mxu0 0.0
  %255 = vmatpush.msra.mxu0 0.0
  %256 = vmatpush.msra.mxu0 0.0
  %257 = vmatpush.msra.mxu0 0.0
  %258 = vmatpush.msra.mxu0 0.0
  %259 = vmatpush.msra.mxu0 0.0
  %260 = vmatpush.msra.mxu0 0.0
  %261 = vmatpush.msra.mxu0 0.0
  %262 = vmatpush.msra.mxu0 0.0
  %263 = vmatpush.msra.mxu0 0.0
  %264 = vmatpush.msra.mxu0 0.0
  %265 = vmatpush.msra.mxu0 %v69
  %266 = vmatpush.msra.mxu0 %v24
  %267 = vmatmul.f32.gmra.mxu0 %v38
  %v268 = vpop.f32.mrf.mxu0
  %v269 = vadd.f32 0.0, %v268
  %270 = vmatmul.f32.gmra.mxu0 %v41
  %v271 = vpop.f32.mrf.mxu0
  %v272 = vadd.f32 0.0, %v271
  %273 = vmatmul.f32.gmra.mxu0 %v44
  %v274 = vpop.f32.mrf.mxu0
  %v275 = vadd.f32 0.0, %v274
  %276 = vmatmul.f32.gmra.mxu0 %v47
  %v277 = vpop.f32.mrf.mxu0
  %v278 = vadd.f32 0.0, %v277
  %279 = vdwg.mxu0
  %280 = vmatpush.msra.mxu0 0.0
  %281 = vmatpush.msra.mxu0 0.0
  %282 = vmatpush.msra.mxu0 0.0
  %283 = vmatpush.msra.mxu0 0.0
  %284 = vmatpush.msra.mxu0 0.0
  %285 = vmatpush.msra.mxu0 0.0
  %286 = vmatpush.msra.mxu0 0.0
  %287 = vmatpush.msra.mxu0 0.0
  %288 = vmatpush.msra.mxu0 0.0
  %289 = vmatpush.msra.mxu0 0.0
  %290 = vmatpush.msra.mxu0 0.0
  %291 = vmatpush.msra.mxu0 0.0
  %292 = vmatpush.msra.mxu0 0.0
  %293 = vmatpush.msra.mxu0 0.0
  %294 = vmatpush.msra.mxu0 %v72
  %295 = vmatpush.msra.mxu0 %v25
  %296 = vmatmul.f32.gmra.mxu0 %v38
  %v297 = vpop.f32.mrf.mxu0
  %v298 = vadd.f32 0.0, %v297
  %299 = vmatmul.f32.gmra.mxu0 %v41
  %v300 = vpop.f32.mrf.mxu0
  %v301 = vadd.f32 0.0, %v300
  %302 = vmatmul.f32.gmra.mxu0 %v44
  %v303 = vpop.f32.mrf.mxu0
  %v304 = vadd.f32 0.0, %v303
  %305 = vmatmul.f32.gmra.mxu0 %v47
  %v306 = vpop.f32.mrf.mxu0
  %v307 = vadd.f32 0.0, %v306
  %308 = vdwg.mxu0
  %309 = vmatpush.msra.mxu0 0.0
  %310 = vmatpush.msra.mxu0 0.0
  %311 = vmatpush.msra.mxu0 0.0
  %312 = vmatpush.msra.mxu0 0.0
  %313 = vmatpush.msra.mxu0 0.0
  %314 = vmatpush.msra.mxu0 0.0
  %315 = vmatpush.msra.mxu0 0.0
  %316 = vmatpush.msra.mxu0 0.0
  %317 = vmatpush.msra.mxu0 0.0
  %318 = vmatpush.msra.mxu0 0.0
  %319 = vmatpush.msra.mxu0 0.0
  %320 = vmatpush.msra.mxu0 0.0
  %321 = vmatpush.msra.mxu0 0.0
  %322 = vmatpush.msra.mxu0 0.0
  %323 = vmatpush.msra.mxu0 %v75
  %324 = vmatpush.msra.mxu0 %v26
  %325 = vmatmul.f32.gmra.mxu0 %v38
  %v326 = vpop.f32.mrf.mxu0
  %v327 = vadd.f32 0.0, %v326
  %328 = vmatmul.f32.gmra.mxu0 %v41
  %v329 = vpop.f32.mrf.mxu0
  %v330 = vadd.f32 0.0, %v329
  %331 = vmatmul.f32.gmra.mxu0 %v44
  %v332 = vpop.f32.mrf.mxu0
  %v333 = vadd.f32 0.0, %v332
  %334 = vmatmul.f32.gmra.mxu0 %v47
  %v335 = vpop.f32.mrf.mxu0
  %v336 = vadd.f32 0.0, %v335
  %337 = vdwg.mxu0
  %347 = vrot.lane.b32.xlu0 %v98, 127
  %v348 = vpop.permute.xlu0 %347
  %349 = vrot.lane.b32.xlu0 %v127, 127
  %v350 = vpop.permute.xlu0 %349
  %351 = vrot.lane.b32.xlu0 %v156, 127
  %v352 = vpop.permute.xlu0 %351
  %353 = vrot.lane.b32.xlu0 %v185, 127
  %v354 = vpop.permute.xlu0 %353
  %355 = vrot.lane.b32.xlu0 %v214, 127
  %v356 = vpop.permute.xlu0 %355
  %357 = vrot.lane.b32.xlu0 %v243, 127
  %v358 = vpop.permute.xlu0 %357
  %359 = vrot.lane.b32.xlu0 %v272, 127
  %v360 = vpop.permute.xlu0 %359
  %361 = vrot.lane.b32.xlu0 %v301, 127
  %v362 = vpop.permute.xlu0 %361
  %363 = vrot.lane.b32.xlu0 %v330, 127
  %v364 = vpop.permute.xlu0 %363
  %vm365 = vcmask 1039360
  %v366 = vsel %vm365, %v348, %v350
  %v367 = vsel %vm365, %v350, %v352
  %v368 = vsel %vm365, %v352, %v354
  %v369 = vsel %vm365, %v354, %v356
  %v370 = vsel %vm365, %v356, %v358
  %v371 = vsel %vm365, %v358, %v360
  %v372 = vsel %vm365, %v360, %v362
  %v373 = vsel %vm365, %v362, %v364
  %v383 = vadd.f32 %v95, %v366
  %v384 = vadd.f32 %v124, %v367
  %v385 = vadd.f32 %v153, %v368
  %v386 = vadd.f32 %v182, %v369
  %v387 = vadd.f32 %v211, %v370
  %v388 = vadd.f32 %v240, %v371
  %v389 = vadd.f32 %v269, %v372
  %v390 = vadd.f32 %v298, %v373
  %v391 = vadd.f32 %v327, %v364
  %401 = vrot.lane.b32.xlu0 %v101, 95
  %v402 = vpop.permute.xlu0 %401
  %403 = vrot.lane.b32.xlu0 %v130, 95
  %v404 = vpop.permute.xlu0 %403
  %405 = vrot.lane.b32.xlu0 %v159, 95
  %v406 = vpop.permute.xlu0 %405
  %407 = vrot.lane.b32.xlu0 %v188, 95
  %v408 = vpop.permute.xlu0 %407
  %409 = vrot.lane.b32.xlu0 %v217, 95
  %v410 = vpop.permute.xlu0 %409
  %411 = vrot.lane.b32.xlu0 %v246, 95
  %v412 = vpop.permute.xlu0 %411
  %413 = vrot.lane.b32.xlu0 %v275, 95
  %v414 = vpop.permute.xlu0 %413
  %415 = vrot.lane.b32.xlu0 %v304, 95
  %v416 = vpop.permute.xlu0 %415
  %417 = vrot.lane.b32.xlu0 %v333, 95
  %v418 = vpop.permute.xlu0 %417
  %vm419 = vcmask 777216
  %v420 = vsel %vm419, %v402, %v404
  %v421 = vsel %vm419, %v404, %v406
  %v422 = vsel %vm419, %v406, %v408
  %v423 = vsel %vm419, %v408, %v410
  %v424 = vsel %vm419, %v410, %v412
  %v425 = vsel %vm419, %v412, %v414
  %v426 = vsel %vm419, %v414, %v416
  %v427 = vsel %vm419, %v416, %v418
  %v437 = vadd.f32 %v383, %v420
  %v438 = vadd.f32 %v384, %v421
  %v439 = vadd.f32 %v385, %v422
  %v440 = vadd.f32 %v386, %v423
  %v441 = vadd.f32 %v387, %v424
  %v442 = vadd.f32 %v388, %v425
  %v443 = vadd.f32 %v389, %v426
  %v444 = vadd.f32 %v390, %v427
  %v445 = vadd.f32 %v391, %v418
  %455 = vrot.lane.b32.xlu0 %v104, 94
  %v456 = vpop.permute.xlu0 %455
  %457 = vrot.lane.b32.xlu0 %v133, 94
  %v458 = vpop.permute.xlu0 %457
  %459 = vrot.lane.b32.xlu0 %v162, 94
  %v460 = vpop.permute.xlu0 %459
  %461 = vrot.lane.b32.xlu0 %v191, 94
  %v462 = vpop.permute.xlu0 %461
  %463 = vrot.lane.b32.xlu0 %v220, 94
  %v464 = vpop.permute.xlu0 %463
  %465 = vrot.lane.b32.xlu0 %v249, 94
  %v466 = vpop.permute.xlu0 %465
  %467 = vrot.lane.b32.xlu0 %v278, 94
  %v468 = vpop.permute.xlu0 %467
  %469 = vrot.lane.b32.xlu0 %v307, 94
  %v470 = vpop.permute.xlu0 %469
  %471 = vrot.lane.b32.xlu0 %v336, 94
  %v472 = vpop.permute.xlu0 %471
  %vm473 = vcmask 769024
  %v474 = vsel %vm473, %v456, %v458
  %v475 = vsel %vm473, %v458, %v460
  %v476 = vsel %vm473, %v460, %v462
  %v477 = vsel %vm473, %v462, %v464
  %v478 = vsel %vm473, %v464, %v466
  %v479 = vsel %vm473, %v466, %v468
  %v480 = vsel %vm473, %v468, %v470
  %v481 = vsel %vm473, %v470, %v472
  %v491 = vadd.f32 %v437, %v474
  %v492 = vadd.f32 %v438, %v475
  %v493 = vadd.f32 %v439, %v476
  %v494 = vadd.f32 %v440, %v477
  %v495 = vadd.f32 %v441, %v478
  %v496 = vadd.f32 %v442, %v479
  %v497 = vadd.f32 %v443, %v480
  %v498 = vadd.f32 %v444, %v481
  %v499 = vadd.f32 %v445, %v472
  %v500 = vld [vmem:[%s2] sm:$0xff]
  %502 = vset.pattern.permute.xlu0 0
  %503 = vperm.xlu0 %502, %v500
  %v504 = vpop.permute.xlu0 %503
  %v506 = vadd.f32 %v491, %v504
  %v507 = vadd.f32 %v492, %v504
  %v508 = vadd.f32 %v493, %v504
  %v509 = vadd.f32 %v494, %v504
  %v510 = vadd.f32 %v495, %v504
  %v511 = vadd.f32 %v496, %v504
  %v512 = vadd.f32 %v497, %v504
  %v513 = vadd.f32 %v498, %v504
  %v514 = vadd.f32 %v499, %v504
  %v515 = vsub.f32 0.0, %v506
  %v516 = vsub.f32 0.0, %v507
  %v517 = vsub.f32 0.0, %v508
  %v518 = vsub.f32 0.0, %v509
  %v519 = vsub.f32 0.0, %v510
  %v520 = vsub.f32 0.0, %v511
  %v521 = vsub.f32 0.0, %v512
  %v522 = vsub.f32 0.0, %v513
  %v523 = vsub.f32 0.0, %v514
  %v524 = vmul.f32 %v515, 1.442695
  %v525 = vpow.pop %v524
  %v526 = vmul.f32 %v516, 1.442695
  %v527 = vpow.pop %v526
  %v528 = vmul.f32 %v517, 1.442695
  %v529 = vpow.pop %v528
  %v530 = vmul.f32 %v518, 1.442695
  %v531 = vpow.pop %v530
  %v532 = vmul.f32 %v519, 1.442695
  %v533 = vpow.pop %v532
  %v534 = vmul.f32 %v520, 1.442695
  %v535 = vpow.pop %v534
  %v536 = vmul.f32 %v521, 1.442695
  %v537 = vpow.pop %v536
  %v538 = vmul.f32 %v522, 1.442695
  %v539 = vpow.pop %v538
  %v540 = vmul.f32 %v523, 1.442695
  %v541 = vpow.pop %v540
  %v542 = vadd.f32 %v525, 1.0
  %v543 = vadd.f32 %v527, 1.0
  %v544 = vadd.f32 %v529, 1.0
  %v545 = vadd.f32 %v531, 1.0
  %v546 = vadd.f32 %v533, 1.0
  %v547 = vadd.f32 %v535, 1.0
  %v548 = vadd.f32 %v537, 1.0
  %v549 = vadd.f32 %v539, 1.0
  %v550 = vadd.f32 %v541, 1.0
  %v551 = vrcp.pop %v542
  %v552 = vrcp.pop %v543
  %v553 = vrcp.pop %v544
  %v554 = vrcp.pop %v545
  %v555 = vrcp.pop %v546
  %v556 = vrcp.pop %v547
  %v557 = vrcp.pop %v548
  %v558 = vrcp.pop %v549
  %v559 = vrcp.pop %v550
  %v560 = vmul.f32 %v542, %v551
  %v561 = vmul.f32 %v543, %v552
  %v562 = vmul.f32 %v544, %v553
  %v563 = vmul.f32 %v545, %v554
  %v564 = vmul.f32 %v546, %v555
  %v565 = vmul.f32 %v547, %v556
  %v566 = vmul.f32 %v548, %v557
  %v567 = vmul.f32 %v549, %v558
  %v568 = vmul.f32 %v550, %v559
  %v569 = vsub.f32 2.0, %v560
  %v570 = vsub.f32 2.0, %v561
  %v571 = vsub.f32 2.0, %v562
  %v572 = vsub.f32 2.0, %v563
  %v573 = vsub.f32 2.0, %v564
  %v574 = vsub.f32 2.0, %v565
  %v575 = vsub.f32 2.0, %v566
  %v576 = vsub.f32 2.0, %v567
  %v577 = vsub.f32 2.0, %v568
  %v578 = vmul.f32 %v551, %v569
  %v579 = vmul.f32 %v552, %v570
  %v580 = vmul.f32 %v553, %v571
  %v581 = vmul.f32 %v554, %v572
  %v582 = vmul.f32 %v555, %v573
  %v583 = vmul.f32 %v556, %v574
  %v584 = vmul.f32 %v557, %v575
  %v585 = vmul.f32 %v558, %v576
  %v586 = vmul.f32 %v559, %v577
  %v587 = vmul.f32 %v506, %v578
  %v588 = vmul.f32 %v507, %v579
  %v589 = vmul.f32 %v508, %v580
  %v590 = vmul.f32 %v509, %v581
  %v591 = vmul.f32 %v510, %v582
  %v592 = vmul.f32 %v511, %v583
  %v593 = vmul.f32 %v512, %v584
  %v594 = vmul.f32 %v513, %v585
  %v595 = vmul.f32 %v514, %v586
  %vm596 = vcmask 259072
  %597 = vst.msk [vmem:[%s3] sm:$0x3f] %vm596, %v587
  %599 = vrot.lane.b32.xlu0 %v587, 127
  %v600 = vpop.permute.xlu0 %599
  %vm602 = vcmask 521472
  %603 = vst.msk [vmem:[%s3] sm:$0x3f] %vm602, %v600
  %604 = vrot.lane.b32.xlu0 %v587, 126
  %v605 = vpop.permute.xlu0 %604
  %vm607 = vcmask 783872
  %608 = vst.msk [vmem:[%s3] sm:$0x3f] %vm607, %v605
  %610 = vrot.lane.b32.xlu0 %v587, 125
  %v611 = vpop.permute.xlu0 %610
  %612 = vrot.lane.b32.xlu0 %v588, 125
  %v613 = vpop.permute.xlu0 %612
  %vm614 = vcmask 1022976
  %v615 = vsel %vm614, %v611, %v613
  %vm617 = vcmask 1046272
  %618 = vst.msk [vmem:[%s3] sm:$0x3f] %vm617, %v615
  %619 = vrot.lane.b32.xlu0 %v588, 124
  %v620 = vpop.permute.xlu0 %619
  %622 = vst.msk [vmem:[%s3 + $0x8] sm:$0x3f] %vm596, %v620
  %623 = vrot.lane.b32.xlu0 %v588, 123
  %v624 = vpop.permute.xlu0 %623
  %626 = vst.msk [vmem:[%s3 + $0x8] sm:$0x3f] %vm602, %v624
  %627 = vrot.lane.b32.xlu0 %v588, 122
  %v628 = vpop.permute.xlu0 %627
  %630 = vst.msk [vmem:[%s3 + $0x8] sm:$0x3f] %vm607, %v628
  %632 = vrot.lane.b32.xlu0 %v588, 121
  %v633 = vpop.permute.xlu0 %632
  %634 = vrot.lane.b32.xlu0 %v589, 121
  %v635 = vpop.permute.xlu0 %634
  %vm636 = vcmask 990208
  %v637 = vsel %vm636, %v633, %v635
  %639 = vst.msk [vmem:[%s3 + $0x8] sm:$0x3f] %vm617, %v637
  %640 = vrot.lane.b32.xlu0 %v589, 120
  %v641 = vpop.permute.xlu0 %640
  %643 = vst.msk [vmem:[%s3 + $0x10] sm:$0x3f] %vm596, %v641
  %644 = vrot.lane.b32.xlu0 %v589, 119
  %v645 = vpop.permute.xlu0 %644
  %647 = vst.msk [vmem:[%s3 + $0x10] sm:$0x3f] %vm602, %v645
  %648 = vrot.lane.b32.xlu0 %v589, 118
  %v649 = vpop.permute.xlu0 %648
  %651 = vst.msk [vmem:[%s3 + $0x10] sm:$0x3f] %vm607, %v649
  %653 = vrot.lane.b32.xlu0 %v589, 117
  %v654 = vpop.permute.xlu0 %653
  %655 = vrot.lane.b32.xlu0 %v590, 117
  %v656 = vpop.permute.xlu0 %655
  %vm657 = vcmask 957440
  %v658 = vsel %vm657, %v654, %v656
  %660 = vst.msk [vmem:[%s3 + $0x10] sm:$0x3f] %vm617, %v658
  %661 = vrot.lane.b32.xlu0 %v590, 116
  %v662 = vpop.permute.xlu0 %661
  %664 = vst.msk [vmem:[%s3 + $0x18] sm:$0x3f] %vm596, %v662
  %665 = vrot.lane.b32.xlu0 %v590, 115
  %v666 = vpop.permute.xlu0 %665
  %668 = vst.msk [vmem:[%s3 + $0x18] sm:$0x3f] %vm602, %v666
  %669 = vrot.lane.b32.xlu0 %v590, 114
  %v670 = vpop.permute.xlu0 %669
  %672 = vst.msk [vmem:[%s3 + $0x18] sm:$0x3f] %vm607, %v670
  %674 = vrot.lane.b32.xlu0 %v590, 113
  %v675 = vpop.permute.xlu0 %674
  %676 = vrot.lane.b32.xlu0 %v591, 113
  %v677 = vpop.permute.xlu0 %676
  %vm678 = vcmask 924672
  %v679 = vsel %vm678, %v675, %v677
  %681 = vst.msk [vmem:[%s3 + $0x18] sm:$0x3f] %vm617, %v679
  %682 = vrot.lane.b32.xlu0 %v591, 112
  %v683 = vpop.permute.xlu0 %682
  %685 = vst.msk [vmem:[%s3 + $0x20] sm:$0x3f] %vm596, %v683
  %686 = vrot.lane.b32.xlu0 %v591, 111
  %v687 = vpop.permute.xlu0 %686
  %689 = vst.msk [vmem:[%s3 + $0x20] sm:$0x3f] %vm602, %v687
  %690 = vrot.lane.b32.xlu0 %v591, 110
  %v691 = vpop.permute.xlu0 %690
  %693 = vst.msk [vmem:[%s3 + $0x20] sm:$0x3f] %vm607, %v691
  %695 = vrot.lane.b32.xlu0 %v591, 109
  %v696 = vpop.permute.xlu0 %695
  %697 = vrot.lane.b32.xlu0 %v592, 109
  %v698 = vpop.permute.xlu0 %697
  %vm699 = vcmask 891904
  %v700 = vsel %vm699, %v696, %v698
  %702 = vst.msk [vmem:[%s3 + $0x20] sm:$0x3f] %vm617, %v700
  %703 = vrot.lane.b32.xlu0 %v592, 108
  %v704 = vpop.permute.xlu0 %703
  %706 = vst.msk [vmem:[%s3 + $0x28] sm:$0x3f] %vm596, %v704
  %707 = vrot.lane.b32.xlu0 %v592, 107
  %v708 = vpop.permute.xlu0 %707
  %710 = vst.msk [vmem:[%s3 + $0x28] sm:$0x3f] %vm602, %v708
  %711 = vrot.lane.b32.xlu0 %v592, 106
  %v712 = vpop.permute.xlu0 %711
  %714 = vst.msk [vmem:[%s3 + $0x28] sm:$0x3f] %vm607, %v712
  %716 = vrot.lane.b32.xlu0 %v592, 105
  %v717 = vpop.permute.xlu0 %716
  %718 = vrot.lane.b32.xlu0 %v593, 105
  %v719 = vpop.permute.xlu0 %718
  %vm720 = vcmask 859136
  %v721 = vsel %vm720, %v717, %v719
  %723 = vst.msk [vmem:[%s3 + $0x28] sm:$0x3f] %vm617, %v721
  %724 = vrot.lane.b32.xlu0 %v593, 104
  %v725 = vpop.permute.xlu0 %724
  %727 = vst.msk [vmem:[%s3 + $0x30] sm:$0x3f] %vm596, %v725
  %728 = vrot.lane.b32.xlu0 %v593, 103
  %v729 = vpop.permute.xlu0 %728
  %731 = vst.msk [vmem:[%s3 + $0x30] sm:$0x3f] %vm602, %v729
  %732 = vrot.lane.b32.xlu0 %v593, 102
  %v733 = vpop.permute.xlu0 %732
  %735 = vst.msk [vmem:[%s3 + $0x30] sm:$0x3f] %vm607, %v733
  %737 = vrot.lane.b32.xlu0 %v593, 101
  %v738 = vpop.permute.xlu0 %737
  %739 = vrot.lane.b32.xlu0 %v594, 101
  %v740 = vpop.permute.xlu0 %739
  %vm741 = vcmask 826368
  %v742 = vsel %vm741, %v738, %v740
  %744 = vst.msk [vmem:[%s3 + $0x30] sm:$0x3f] %vm617, %v742
  %745 = vrot.lane.b32.xlu0 %v594, 100
  %v746 = vpop.permute.xlu0 %745
  %748 = vst.msk [vmem:[%s3 + $0x38] sm:$0x3f] %vm596, %v746
  %749 = vrot.lane.b32.xlu0 %v594, 99
  %v750 = vpop.permute.xlu0 %749
  %752 = vst.msk [vmem:[%s3 + $0x38] sm:$0x3f] %vm602, %v750
  %753 = vrot.lane.b32.xlu0 %v594, 98
  %v754 = vpop.permute.xlu0 %753
  %756 = vst.msk [vmem:[%s3 + $0x38] sm:$0x3f] %vm607, %v754
  %758 = vrot.lane.b32.xlu0 %v594, 97
  %v759 = vpop.permute.xlu0 %758
  %760 = vrot.lane.b32.xlu0 %v595, 97
  %v761 = vpop.permute.xlu0 %760
  %vm762 = vcmask 793600
  %v763 = vsel %vm762, %v759, %v761
  %765 = vst.msk [vmem:[%s3 + $0x38] sm:$0x3f] %vm617, %v763
  // Predicated region
  $region14: #{conv2d_silu_pallas.1} parent=0 // pred_check
    _
  $region15: #{conv2d_silu_pallas.1} parent=0 // pred_check_branch
    %767 = sbr.rel (0) target = $region17
  $region16: #{conv2d_silu_pallas.1} parent=0 // pred_region
    _
  $region17: #{conv2d_silu_pallas.1} parent=0 // pred_fallthru
    _
  // Predicated region
  $region18: #{conv2d_silu_pallas.1} parent=0 // pred_check
    _
  $region19: #{conv2d_silu_pallas.1} parent=0 // pred_check_branch
    %769 = sbr.rel (0) target = $region21
  $region20: #{conv2d_silu_pallas.1} parent=0 // pred_region
    _
  $region21: #{conv2d_silu_pallas.1} parent=0 // pred_fallthru
    _

</llo_original>
